<compile_context>
chip_gen: v6e
topology: v6e:2x2x1
jax: 0.10.0
libtpu: 0.0.40
codegen_flags: <defaults>
</compile_context>

<pallas_src>
import functools

import jax
import jax.numpy as jnp
from jax.experimental import pallas as pl
from jax.experimental.pallas import tpu as pltpu


# --------------------------------------------------------------------------- #
# Shared finalize: stacked FC (1x1 convs) + PReLU + output store.
# --------------------------------------------------------------------------- #
def _fc_prelu_store(avg, mx, w1t_ref, b1_ref, w2t_ref, b2_ref, alpha_ref, o_ref):
    tn = avg.shape[0]
    pooled = jnp.concatenate([avg, mx], axis=0)               # (2*tn, C)

    # fc = Conv2d(C, Ch, 1) -> ReLU -> Conv2d(Ch, C, 1); weights pre-transposed.
    h = jnp.dot(pooled, w1t_ref[...],
                preferred_element_type=jnp.float32) + b1_ref[...]
    h = jnp.maximum(h, 0.0)                                   # ReLU
    out2 = jnp.dot(h, w2t_ref[...],
                   preferred_element_type=jnp.float32) + b2_ref[...]
    out = out2[:tn] + out2[tn:]                               # avg path + max path

    # PReLU (module attribute named `sigmoid` but is nn.PReLU(): one learned
    # scalar).  If the model used PReLU(num_parameters=C), alpha would need to
    # become a (1, C) VMEM vector instead of an SMEM scalar.
    alpha = alpha_ref[0, 0]
    o_ref[...] = jnp.where(out >= 0, out, alpha * out)


# --------------------------------------------------------------------------- #
# Variant A: whole spatial extent in one block (thw == hw).  No accumulators,
# no masks, one grid axis.  This is the fast path for typical feature maps.
# --------------------------------------------------------------------------- #
def _ca_single_kernel(x_ref, w1t_ref, b1_ref, w2t_ref, b2_ref, alpha_ref,
                      o_ref, *, hw):
    x = x_ref[...]                                            # (tn, C, hw) f32
    avg = jnp.sum(x, axis=-1) * (1.0 / hw)
    mx = jnp.max(x, axis=-1)
    _fc_prelu_store(avg, mx, w1t_ref, b1_ref, w2t_ref, b2_ref, alpha_ref, o_ref)


# --------------------------------------------------------------------------- #
# Variant B: streamed HW chunks (hw too large for one block).  Lane-wide
# (tn, C, 128) accumulators; per-step work is pure elementwise VPU add/max;
# the single XLU lane reduce happens once in the finalize.  The remainder
# mask is gated to the last chunk only.
# --------------------------------------------------------------------------- #
def _ca_stream_kernel(x_ref, w1t_ref, b1_ref, w2t_ref, b2_ref, alpha_ref,
                      o_ref, sum_acc, max_acc, *, hw, thw, needs_mask):
    s = pl.program_id(1)
    last = pl.num_programs(1) - 1

    @pl.when(s == 0)
    def _init():
        sum_acc[...] = jnp.zeros_like(sum_acc)
        max_acc[...] = jnp.full_like(max_acc, -jnp.inf)

    x = x_ref[...]                                            # (tn, C, thw)
    k = thw // 128                                            # thw % 128 == 0

    def accumulate(xs, xm):
        # Static 128-lane slabs: elementwise VPU adds/maxes, no cross-lane work.
        s_part = xs[:, :, 0:128]
        m_part = xm[:, :, 0:128]
        for j in range(1, k):
            lo = j * 128
            s_part = s_part + xs[:, :, lo:lo + 128]
            m_part = jnp.maximum(m_part, xm[:, :, lo:lo + 128])
        sum_acc[...] += s_part
        max_acc[...] = jnp.maximum(max_acc[...], m_part)

    if needs_mask:
        @pl.when(s < last)
        def _full_chunk():
            accumulate(x, x)

        @pl.when(s == last)
        def _partial_chunk():
            # Only the final chunk can contain out-of-range (garbage) lanes.
            col = jax.lax.broadcasted_iota(jnp.int32, x.shape, 2) + s * thw
            valid = col < hw
            accumulate(jnp.where(valid, x, 0.0),
                       jnp.where(valid, x, -jnp.inf))
    else:
        accumulate(x, x)

    @pl.when(s == last)
    def _finalize():
        avg = jnp.sum(sum_acc[...], axis=-1) * (1.0 / hw)     # true HW
        mx = jnp.max(max_acc[...], axis=-1)
        _fc_prelu_store(avg, mx, w1t_ref, b1_ref, w2t_ref, b2_ref, alpha_ref,
                        o_ref)


# --------------------------------------------------------------------------- #
# Wrapper
# --------------------------------------------------------------------------- #
def channel_attention(x_nchw, w1, b1, w2, b2, alpha, *, tn=None, thw=None):
    """x_nchw: (N, C, H, W) f32; w1: (Ch, C); b1: (1, Ch); w2: (C, Ch);
    b2: (1, C); alpha: (1, 1).  Returns (N, C, 1, 1) f32."""
    N, C, H, W = x_nchw.shape
    hw = H * W

    # Free reshape for contiguous NCHW; no padded copy of x is materialized.
    x_flat = x_nchw.reshape(N, C, hw).astype(jnp.float32)

    # --- generation-aware VMEM budget --------------------------------------
    try:
        vmem_cap = int(pltpu.get_tpu_info().vmem_capacity_bytes)
    except Exception:  # conservative fallback if the query is unavailable
        vmem_cap = 64 * 1024 * 1024
    x_budget = max(8 * 1024 * 1024, vmem_cap // 4)   # ~32 MiB v5e/v6e, ~16 MiB v7x

    # --- tile sizing --------------------------------------------------------
    if tn is None:
        # Full-N block when N is small (full-dim blocks are exempt from the
        # sublane rule); otherwise 8 rows per tile so N >= 16 yields >= 2
        # parallel batch tiles (both TCs busy on v7x).
        tn = N if N <= 8 else 8
    tn = int(tn)

    if thw is None:
        max_thw = x_budget // (2 * tn * C * 4)        # double-buffered x block
        thw = hw if max_thw >= hw else max(128, (max_thw // 128) * 128)
    thw = min(int(thw), hw)
    if thw < hw:
        thw = max(128, (thw // 128) * 128)            # lane-aligned chunk
    single_step = thw >= hw
    if single_step:
        thw = hw                                      # full-dim block (exempt)

    n_tiles = pl.cdiv(N, tn)
    needs_mask = (not single_step) and (hw % thw != 0)

    # --- VMEM limit from the actual footprint -------------------------------
    need = 2 * tn * C * thw * 4                       # double-buffered x
    if not single_step:
        need += 2 * tn * C * 128 * 4                  # sum/max accumulators
    need += 4 * (w1.size + b1.size + w2.size + b2.size) + 2 * tn * C * 4
    vmem_limit = int(min(vmem_cap, max(32 * 1024 * 1024, need + (16 << 20))))

    # Pre-transpose the 1x1-conv weights once in the wrapper.
    w1t = jnp.asarray(w1, jnp.float32).T              # (C, Ch)
    w2t = jnp.asarray(w2, jnp.float32).T              # (Ch, C)
    b1f = jnp.asarray(b1, jnp.float32).reshape(1, -1)
    b2f = jnp.asarray(b2, jnp.float32).reshape(1, -1)
    alpha2d = jnp.asarray(alpha, jnp.float32).reshape(1, 1)

    hidden = w1t.shape[1]
    cost = pl.CostEstimate(
        flops=2 * N * C * hw + 8 * N * C * hidden,
        transcendentals=0,
        bytes_accessed=4 * (N * C * hw + N * C
                            + w1t.size + w2t.size + b1f.size + b2f.size),
    )

    vmem = pltpu.MemorySpace.VMEM
    smem = pltpu.MemorySpace.SMEM
    param_specs = [
        pl.BlockSpec(memory_space=vmem),              # w1t (C, Ch)
        pl.BlockSpec(memory_space=vmem),              # b1  (1, Ch)
        pl.BlockSpec(memory_space=vmem),              # w2t (Ch, C)
        pl.BlockSpec(memory_space=vmem),              # b2  (1, C)
        pl.BlockSpec(memory_space=smem),              # alpha (1, 1)
    ]

    if single_step:
        kernel = functools.partial(_ca_single_kernel, hw=hw)
        grid_spec = pltpu.PrefetchScalarGridSpec(
            num_scalar_prefetch=0,
            grid=(n_tiles,),
            in_specs=[pl.BlockSpec((tn, C, hw), lambda n: (n, 0, 0))]
            + param_specs,
            out_specs=pl.BlockSpec((tn, C), lambda n: (n, 0)),
        )
        dim_sem = ("parallel",)
    else:
        kernel = functools.partial(_ca_stream_kernel, hw=hw, thw=thw,
                                   needs_mask=needs_mask)
        grid_spec = pltpu.PrefetchScalarGridSpec(
            num_scalar_prefetch=0,
            grid=(n_tiles, pl.cdiv(hw, thw)),
            in_specs=[pl.BlockSpec((tn, C, thw), lambda n, s: (n, 0, s))]
            + param_specs,
            out_specs=pl.BlockSpec((tn, C), lambda n, s: (n, 0)),
            scratch_shapes=[pltpu.VMEM((tn, C, 128), jnp.float32),   # sum acc
                            pltpu.VMEM((tn, C, 128), jnp.float32)],  # max acc
        )
        dim_sem = ("parallel", "arbitrary")

    out = pl.pallas_call(
        kernel,
        out_shape=jax.ShapeDtypeStruct((N, C), jnp.float32),
        grid_spec=grid_spec,
        compiler_params=pltpu.CompilerParams(
            dimension_semantics=dim_sem,
            vmem_limit_bytes=vmem_limit,
        ),
        cost_estimate=cost,
    )(x_flat, w1t, b1f, w2t, b2f, alpha2d)

    # TODO(synk): fuse the (N, C, 1, 1) scale into the consumer kernel instead
    # of round-tripping it through HBM.
    return out.reshape(N, C, 1, 1)


# --------------------------------------------------------------------------- #
# Reference / params / demo
# --------------------------------------------------------------------------- #
def init_params(key, in_planes, ratio=16):
    hidden = in_planes // ratio
    k1, k2, k3, k4 = jax.random.split(key, 4)
    w1 = jax.random.normal(k1, (hidden, in_planes), jnp.float32) * 0.1
    b1 = jax.random.normal(k2, (1, hidden), jnp.float32) * 0.1
    w2 = jax.random.normal(k3, (in_planes, hidden), jnp.float32) * 0.1
    b2 = jax.random.normal(k4, (1, in_planes), jnp.float32) * 0.1
    alpha = jnp.full((1, 1), 0.25, jnp.float32)       # PReLU default init
    return w1, b1, w2, b2, alpha


def reference(x_nchw, w1, b1, w2, b2, alpha):
    hi = jax.lax.Precision.HIGHEST
    avg = jnp.mean(x_nchw, axis=(2, 3))
    mx = jnp.max(x_nchw, axis=(2, 3))

    def fc(v):
        h = jnp.maximum(jnp.dot(v, w1.T, precision=hi) + b1, 0.0)
        return jnp.dot(h, w2.T, precision=hi) + b2

    out = fc(avg) + fc(mx)
    out = jnp.where(out >= 0, out, alpha[0, 0] * out)
    return out[:, :, None, None]


if __name__ == "__main__":
    key = jax.random.PRNGKey(0)
    kx1, kx2, kp = jax.random.split(key, 3)

    C, ratio = 64, 16                                  # hidden = 4
    w1, b1, w2, b2, alpha = init_params(kp, C, ratio)

    # Test 1 (primary, fast path): whole spatial extent in one block,
    # no padding, no mask; grid = (1,).
    x1 = jax.random.normal(kx1, (2, C, 16, 16), jnp.float32)
    y1 = jax.block_until_ready(channel_attention(x1, w1, b1, w2, b2, alpha))
    r1 = reference(x1, w1, b1, w2, b2, alpha)
    assert y1.shape == (2, C, 1, 1)
    assert jnp.allclose(y1, r1, atol=1e-4, rtol=1e-4), (
        float(jnp.max(jnp.abs(y1 - r1))))

    # Test 2 (streaming path): forced thw=128 with hw=400 exercises the
    # multi-chunk accumulation + remainder mask, and N=10 with tn=8 exercises
    # the ragged batch edge block (no wrapper padding anywhere).
    x2 = jax.random.normal(kx2, (10, C, 20, 20), jnp.float32)
    y2 = jax.block_until_ready(
        channel_attention(x2, w1, b1, w2, b2, alpha, thw=128))
    r2 = reference(x2, w1, b1, w2, b2, alpha)
    assert y2.shape == (10, C, 1, 1)
    assert jnp.allclose(y2, r2, atol=1e-4, rtol=1e-4), (
        float(jnp.max(jnp.abs(y2 - r2))))

    print("KERNEL_OK")
</pallas_src>

<mosaic_0001>
module attributes {stable_mosaic.version = 11 : i64} {
  func.func @_ca_single_kernel(%arg0: i32, %arg1: memref<2x64x256xf32, #tpu.memory_space<vmem>>, %arg2: memref<64x4xf32, #tpu.memory_space<vmem>>, %arg3: memref<1x4xf32, #tpu.memory_space<vmem>>, %arg4: memref<4x64xf32, #tpu.memory_space<vmem>>, %arg5: memref<1x64xf32, #tpu.memory_space<vmem>>, %arg6: memref<1x1xf32, #tpu.memory_space<smem>>, %arg7: memref<2x64xf32, #tpu.memory_space<vmem>>) attributes {dimension_semantics = [#tpu.dimension_semantics<parallel>], iteration_bounds = array<i64: 1>, scalar_prefetch = 0 : i64, scratch_operands = 0 : i64, tpu.core_type = #tpu.core_type<tc>, window_params = [{transform_indices = @transform_0, window_bounds = array<i64: 2, 64, 256>}, {pipeline_mode = #tpu.pipeline_mode<synchronous>, transform_indices = @transform_1, window_bounds = array<i64: 64, 4>}, {pipeline_mode = #tpu.pipeline_mode<synchronous>, transform_indices = @transform_2, window_bounds = array<i64: 1, 4>}, {pipeline_mode = #tpu.pipeline_mode<synchronous>, transform_indices = @transform_3, window_bounds = array<i64: 4, 64>}, {pipeline_mode = #tpu.pipeline_mode<synchronous>, transform_indices = @transform_4, window_bounds = array<i64: 1, 64>}, {transform_indices = @transform_5, window_bounds = array<i64: 1, 1>}, {transform_indices = @transform_6, window_bounds = array<i64: 2, 64>}]} {
    %c0 = arith.constant 0 : index
    %c0_0 = arith.constant 0 : index
    %c0_1 = arith.constant 0 : index
    %0 = vector.load %arg1[%c0, %c0_0, %c0_1] : memref<2x64x256xf32, #tpu.memory_space<vmem>>, vector<2x64x256xf32>
    %cst = arith.constant dense<0.000000e+00> : vector<2x64xf32>
    %1 = vector.multi_reduction <add>, %0, %cst [2] : vector<2x64x256xf32> to vector<2x64xf32>
    %cst_2 = arith.constant 3.906250e-03 : f32
    %2 = vector.broadcast %cst_2 : f32 to vector<2x64xf32>
    %3 = arith.mulf %1, %2 : vector<2x64xf32>
    %cst_3 = arith.constant dense<0xFF800000> : vector<2x64xf32>
    %4 = vector.multi_reduction <maximumf>, %0, %cst_3 [2] : vector<2x64x256xf32> to vector<2x64xf32>
    %5 = tpu.concatenate %3, %4 in 0 : vector<2x64xf32>, vector<2x64xf32> -> vector<4x64xf32>
    %c0_4 = arith.constant 0 : index
    %c0_5 = arith.constant 0 : index
    %6 = vector.load %arg2[%c0_4, %c0_5] : memref<64x4xf32, #tpu.memory_space<vmem>>, vector<64x4xf32>
    %cst_6 = arith.constant dense<0.000000e+00> : vector<4x4xf32>
    %7 = tpu.matmul %5, %6, %cst_6 {dimension_numbers = #tpu.dot_dimension_numbers<[1], [0], [0], [1], [0, 0, 1, 1], [], []>} : vector<4x64xf32>, vector<64x4xf32>, vector<4x4xf32> -> vector<4x4xf32>
    %c0_7 = arith.constant 0 : index
    %c0_8 = arith.constant 0 : index
    %8 = vector.load %arg3[%c0_7, %c0_8] : memref<1x4xf32, #tpu.memory_space<vmem>>, vector<1x4xf32>
    %9 = vector.broadcast %8 : vector<1x4xf32> to vector<4x4xf32>
    %10 = arith.addf %7, %9 : vector<4x4xf32>
    %cst_9 = arith.constant 0.000000e+00 : f32
    %11 = vector.broadcast %cst_9 : f32 to vector<4x4xf32>
    %12 = arith.maximumf %10, %11 : vector<4x4xf32>
    %c0_10 = arith.constant 0 : index
    %c0_11 = arith.constant 0 : index
    %13 = vector.load %arg4[%c0_10, %c0_11] : memref<4x64xf32, #tpu.memory_space<vmem>>, vector<4x64xf32>
    %cst_12 = arith.constant dense<0.000000e+00> : vector<4x64xf32>
    %14 = tpu.matmul %12, %13, %cst_12 {dimension_numbers = #tpu.dot_dimension_numbers<[1], [0], [0], [1], [0, 0, 1, 1], [], []>} : vector<4x4xf32>, vector<4x64xf32>, vector<4x64xf32> -> vector<4x64xf32>
    %c0_13 = arith.constant 0 : index
    %c0_14 = arith.constant 0 : index
    %15 = vector.load %arg5[%c0_13, %c0_14] : memref<1x64xf32, #tpu.memory_space<vmem>>, vector<1x64xf32>
    %16 = vector.broadcast %15 : vector<1x64xf32> to vector<4x64xf32>
    %17 = arith.addf %14, %16 : vector<4x64xf32>
    %18 = vector.extract_strided_slice %17 {offsets = [0, 0], sizes = [2, 64], strides = [1, 1]} : vector<4x64xf32> to vector<2x64xf32>
    %19 = vector.extract_strided_slice %17 {offsets = [2, 0], sizes = [2, 64], strides = [1, 1]} : vector<4x64xf32> to vector<2x64xf32>
    %20 = arith.addf %18, %19 : vector<2x64xf32>
    %c0_15 = arith.constant 0 : index
    %c0_16 = arith.constant 0 : index
    %21 = memref.load %arg6[%c0_15, %c0_16] : memref<1x1xf32, #tpu.memory_space<smem>>
    %cst_17 = arith.constant 0.000000e+00 : f32
    %22 = vector.broadcast %cst_17 : f32 to vector<2x64xf32>
    %23 = arith.cmpf oge, %20, %22 : vector<2x64xf32>
    %24 = vector.broadcast %21 : f32 to vector<2x64xf32>
    %25 = arith.mulf %24, %20 : vector<2x64xf32>
    %26 = arith.select %23, %20, %25 : vector<2x64xi1>, vector<2x64xf32>
    %c0_18 = arith.constant 0 : index
    %c0_19 = arith.constant 0 : index
    %27 = vector.load %arg7[%c0_18, %c0_19] : memref<2x64xf32, #tpu.memory_space<vmem>>, vector<2x64xf32>
    tpu.vector_store %arg7[%c0_18, %c0_19], %26 {strides = array<i32>} : memref<2x64xf32, #tpu.memory_space<vmem>>, vector<2x64xf32>,
    return
  }
  func.func @transform_0(%arg0: i32) -> (i32, i32, i32) {
    %c0_i32 = arith.constant 0 : i32
    %c0_i32_0 = arith.constant 0 : i32
    %c0_i32_1 = arith.constant 0 : i32
    return %arg0, %c0_i32, %c0_i32_0 : i32, i32, i32
  }
  func.func @transform_1(%arg0: i32) -> (i32, i32) {
    %c0_i32 = arith.constant 0 : i32
    %c0_i32_0 = arith.constant 0 : i32
    %c0_i32_1 = arith.constant 0 : i32
    return %c0_i32, %c0_i32_0 : i32, i32
  }
  func.func @transform_2(%arg0: i32) -> (i32, i32) {
    %c0_i32 = arith.constant 0 : i32
    %c0_i32_0 = arith.constant 0 : i32
    %c0_i32_1 = arith.constant 0 : i32
    return %c0_i32, %c0_i32_0 : i32, i32
  }
  func.func @transform_3(%arg0: i32) -> (i32, i32) {
    %c0_i32 = arith.constant 0 : i32
    %c0_i32_0 = arith.constant 0 : i32
    %c0_i32_1 = arith.constant 0 : i32
    return %c0_i32, %c0_i32_0 : i32, i32
  }
  func.func @transform_4(%arg0: i32) -> (i32, i32) {
    %c0_i32 = arith.constant 0 : i32
    %c0_i32_0 = arith.constant 0 : i32
    %c0_i32_1 = arith.constant 0 : i32
    return %c0_i32, %c0_i32_0 : i32, i32
  }
  func.func @transform_5(%arg0: i32) -> (i32, i32) {
    %c0_i32 = arith.constant 0 : i32
    %c0_i32_0 = arith.constant 0 : i32
    %c0_i32_1 = arith.constant 0 : i32
    return %c0_i32, %c0_i32_0 : i32, i32
  }
  func.func @transform_6(%arg0: i32) -> (i32, i32) {
    %c0_i32 = arith.constant 0 : i32
    %c0_i32_0 = arith.constant 0 : i32
    return %arg0, %c0_i32 : i32, i32
  }
}

</mosaic_0001>

<llo_original>
// kernel: tpu_custom_call.1
$region0: #{tpu_custom_call.1}
  #allocation0 [shape = 'u32[]', space=smem, size = 0x4, offset = 0x4, fixed_abs, tag = 'smem constant byte address 0x4 - core index']
  #allocation1 [shape = 'u32[144,128]{1,0:T(1,128)}', space=vmem, size = 0x12000, scoped, tag = 'internal scratch']
  #allocation2 [shape = 'f32[1,1]{1,0:T(1,128)S(6)}', space=smem, size = 0x200, scoped, tag = 'scoped memory for tpu_custom_call.1']
  %s0 = inlined_call_operand.hbm [shape: f32[2,64,256], index: 0, kind: input, shape index: {}]
  %s1 = inlined_call_operand.vmem [shape: f32[64,4], index: 1, kind: input, shape index: {}]
  %s2 = inlined_call_operand.vmem [shape: f32[1,4], index: 2, kind: input, shape index: {}]
  %s3 = inlined_call_operand.vmem [shape: f32[4,64], index: 3, kind: input, shape index: {}]
  %s4 = inlined_call_operand.vmem [shape: f32[1,64], index: 4, kind: input, shape index: {}]
  %s5 = inlined_call_operand.<no memory space> [shape: f32[1,1], index: 5, kind: input, shape index: {}]
  %s6 = inlined_call_operand.hbm [shape: f32[2,64], index: 6, kind: output, shape index: {}]
  %s7 = sld [smem:[#allocation0]]
  $region38: #{tpu_custom_call.1} parent=0
    _
  %s9 = ssub.s32 1, %s7
  %s10 = scalar_select 0, %s9, %s7
  %11 = sst [smem:[#allocation2]] %s5
  $region1: #{tpu_custom_call.1} parent=0
    #allocation3 [shape = 'u8[131072]{0}', space=vmem, size = 0x20000, scoped, tag = 'input window, operand 0, single buffered']
    #allocation4 [shape = 's32[1]{0}', space=sflag, size = 0x4, scoped, tag = 'scoped memory for tpu_custom_call.1']
    #allocation5 [shape = 's32[1]{0}', space=sflag, size = 0x4, scoped, tag = 'scoped memory for tpu_custom_call.1']
    #allocation6 [shape = 'u8[1024]{0}', space=vmem, size = 0x400, scoped, tag = 'output window, operand 0, single buffered']
    %12 = vsyncpa [#allocation4], 0
    %13 = vsyncpa [#allocation5], 0
    // Predicated region
    $region2: #{tpu_custom_call.1} parent=1 // pred_check
      _
    $region3: #{tpu_custom_call.1} parent=1 // pred_check_branch
      %15 = sbr.rel (0) target = $region5
    $region4: #{tpu_custom_call.1} parent=1 // pred_region
      %s17 = ssub.s32 4096, 4096
      %18 = vsyncadd [#allocation4], %s17
      %s19 = sshll.u32 [#allocation3], 4
      %s20 = int_to_ptr.vmem [resolvable:$true] %s19
      %25 = dma.hbm_to_vmem [thread:$0]  %s0, 4096, %s20, [#allocation4], 256, 256, 16
    $region5: #{tpu_custom_call.1} parent=1 // pred_fallthru
      _
    // Predicated region
    $region6: #{tpu_custom_call.1} parent=1 // pred_check
      _
    $region7: #{tpu_custom_call.1} parent=1 // pred_check_branch
      %27 = sbr.rel (0) target = $region9
    $region8: #{tpu_custom_call.1} parent=1 // pred_region
      _
    $region9: #{tpu_custom_call.1} parent=1 // pred_fallthru
      _
    // Predicated region
    $region10: #{tpu_custom_call.1} parent=1 // pred_check
      _
    $region11: #{tpu_custom_call.1} parent=1 // pred_check_branch
      %29 = sbr.rel (0) target = $region13
    $region12: #{tpu_custom_call.1} parent=1 // pred_region
      _
    $region13: #{tpu_custom_call.1} parent=1 // pred_fallthru
      _
    // Predicated region
    $region14: #{tpu_custom_call.1} parent=1 // pred_check
      _
    $region15: #{tpu_custom_call.1} parent=1 // pred_check_branch
      %31 = sbr.rel (0) target = $region17
    $region16: #{tpu_custom_call.1} parent=1 // pred_region
      _
    $region17: #{tpu_custom_call.1} parent=1 // pred_fallthru
      _
    // Predicated region
    $region18: #{tpu_custom_call.1} parent=1 // pred_check
      _
    $region19: #{tpu_custom_call.1} parent=1 // pred_check_branch
      %33 = sbr.rel (0) target = $region21
    $region20: #{tpu_custom_call.1} parent=1 // pred_region
      _
    $region21: #{tpu_custom_call.1} parent=1 // pred_fallthru
      _
    // Predicated region
    $region22: #{tpu_custom_call.1} parent=1 // pred_check
      _
    $region23: #{tpu_custom_call.1} parent=1 // pred_check_branch
      %35 = sbr.rel (0) target = $region25
    $region24: #{tpu_custom_call.1} parent=1 // pred_region
      _
    $region25: #{tpu_custom_call.1} parent=1 // pred_fallthru
      _
    // Predicated region
    $region26: #{tpu_custom_call.1} parent=1 // pred_check
      _
    $region27: #{tpu_custom_call.1} parent=1 // pred_check_branch
      %37 = sbr.rel (0) target = $region29
    $region28: #{tpu_custom_call.1} parent=1 // pred_region
      %38 = dma.done [#allocation4], 4096
    $region29: #{tpu_custom_call.1} parent=1 // pred_fallthru
      _
    %v39 = vld [vmem:[#allocation3] sm:$0xff]
    %v40 = vld [vmem:[#allocation3 + $0x8] sm:$0xff]
    %v41 = vld [vmem:[#allocation3 + $0x10] sm:$0xff]
    %v42 = vld [vmem:[#allocation3 + $0x18] sm:$0xff]
    %v43 = vld [vmem:[#allocation3 + $0x20] sm:$0xff]
    %v44 = vld [vmem:[#allocation3 + $0x28] sm:$0xff]
    %v45 = vld [vmem:[#allocation3 + $0x30] sm:$0xff]
    %v46 = vld [vmem:[#allocation3 + $0x38] sm:$0xff]
    %v47 = vld [vmem:[#allocation3 + $0x40] sm:$0xff]
    %v48 = vld [vmem:[#allocation3 + $0x48] sm:$0xff]
    %v49 = vld [vmem:[#allocation3 + $0x50] sm:$0xff]
    %v50 = vld [vmem:[#allocation3 + $0x58] sm:$0xff]
    %v51 = vld [vmem:[#allocation3 + $0x60] sm:$0xff]
    %v52 = vld [vmem:[#allocation3 + $0x68] sm:$0xff]
    %v53 = vld [vmem:[#allocation3 + $0x70] sm:$0xff]
    %v54 = vld [vmem:[#allocation3 + $0x78] sm:$0xff]
    %v55 = vld [vmem:[#allocation3 + $0x80] sm:$0xff]
    %v56 = vld [vmem:[#allocation3 + $0x88] sm:$0xff]
    %v57 = vld [vmem:[#allocation3 + $0x90] sm:$0xff]
    %v58 = vld [vmem:[#allocation3 + $0x98] sm:$0xff]
    %v59 = vld [vmem:[#allocation3 + $0xa0] sm:$0xff]
    %v60 = vld [vmem:[#allocation3 + $0xa8] sm:$0xff]
    %v61 = vld [vmem:[#allocation3 + $0xb0] sm:$0xff]
    %v62 = vld [vmem:[#allocation3 + $0xb8] sm:$0xff]
    %v63 = vld [vmem:[#allocation3 + $0xc0] sm:$0xff]
    %v64 = vld [vmem:[#allocation3 + $0xc8] sm:$0xff]
    %v65 = vld [vmem:[#allocation3 + $0xd0] sm:$0xff]
    %v66 = vld [vmem:[#allocation3 + $0xd8] sm:$0xff]
    %v67 = vld [vmem:[#allocation3 + $0xe0] sm:$0xff]
    %v68 = vld [vmem:[#allocation3 + $0xe8] sm:$0xff]
    %v69 = vld [vmem:[#allocation3 + $0xf0] sm:$0xff]
    %v70 = vld [vmem:[#allocation3 + $0xf8] sm:$0xff]
    %v71 = vadd.f32 %v39, %v40
    %72 = vadd.xlane.f32.xlu0 %v71
    %v73 = vpop.xlane.xlu0 %72
    %v74 = vadd.f32 %v41, %v42
    %75 = vadd.xlane.f32.xlu0 %v74
    %v76 = vpop.xlane.xlu0 %75
    %v77 = vadd.f32 %v43, %v44
    %78 = vadd.xlane.f32.xlu0 %v77
    %v79 = vpop.xlane.xlu0 %78
    %v80 = vadd.f32 %v45, %v46
    %81 = vadd.xlane.f32.xlu0 %v80
    %v82 = vpop.xlane.xlu0 %81
    %v83 = vadd.f32 %v47, %v48
    %84 = vadd.xlane.f32.xlu0 %v83
    %v85 = vpop.xlane.xlu0 %84
    %v86 = vadd.f32 %v49, %v50
    %87 = vadd.xlane.f32.xlu0 %v86
    %v88 = vpop.xlane.xlu0 %87
    %v89 = vadd.f32 %v51, %v52
    %90 = vadd.xlane.f32.xlu0 %v89
    %v91 = vpop.xlane.xlu0 %90
    %v92 = vadd.f32 %v53, %v54
    %93 = vadd.xlane.f32.xlu0 %v92
    %v94 = vpop.xlane.xlu0 %93
    %v95 = vadd.f32 %v55, %v56
    %96 = vadd.xlane.f32.xlu0 %v95
    %v97 = vpop.xlane.xlu0 %96
    %v98 = vadd.f32 %v57, %v58
    %99 = vadd.xlane.f32.xlu0 %v98
    %v100 = vpop.xlane.xlu0 %99
    %v101 = vadd.f32 %v59, %v60
    %102 = vadd.xlane.f32.xlu0 %v101
    %v103 = vpop.xlane.xlu0 %102
    %v104 = vadd.f32 %v61, %v62
    %105 = vadd.xlane.f32.xlu0 %v104
    %v106 = vpop.xlane.xlu0 %105
    %v107 = vadd.f32 %v63, %v64
    %108 = vadd.xlane.f32.xlu0 %v107
    %v109 = vpop.xlane.xlu0 %108
    %v110 = vadd.f32 %v65, %v66
    %111 = vadd.xlane.f32.xlu0 %v110
    %v112 = vpop.xlane.xlu0 %111
    %v113 = vadd.f32 %v67, %v68
    %114 = vadd.xlane.f32.xlu0 %v113
    %v115 = vpop.xlane.xlu0 %114
    %v116 = vadd.f32 %v69, %v70
    %117 = vadd.xlane.f32.xlu0 %v116
    %v118 = vpop.xlane.xlu0 %117
    %v119 = vmul.f32 %v73, 0.00390625
    %v120 = vmul.f32 %v76, 0.00390625
    %v121 = vmul.f32 %v79, 0.00390625
    %v122 = vmul.f32 %v82, 0.00390625
    %v123 = vmul.f32 %v85, 0.00390625
    %v124 = vmul.f32 %v88, 0.00390625
    %v125 = vmul.f32 %v91, 0.00390625
    %v126 = vmul.f32 %v94, 0.00390625
    %v127 = vmul.f32 %v97, 0.00390625
    %v128 = vmul.f32 %v100, 0.00390625
    %v129 = vmul.f32 %v103, 0.00390625
    %v130 = vmul.f32 %v106, 0.00390625
    %v131 = vmul.f32 %v109, 0.00390625
    %v132 = vmul.f32 %v112, 0.00390625
    %v133 = vmul.f32 %v115, 0.00390625
    %v134 = vmul.f32 %v118, 0.00390625
    %v135 = vmax.f32 %v39, %v40
    %136 = vmax.xlane.f32.xlu0 %v135
    %v137 = vpop.xlane.xlu0 %136
    %v138 = vmax.f32 %v41, %v42
    %139 = vmax.xlane.f32.xlu0 %v138
    %v140 = vpop.xlane.xlu0 %139
    %v141 = vmax.f32 %v43, %v44
    %142 = vmax.xlane.f32.xlu0 %v141
    %v143 = vpop.xlane.xlu0 %142
    %v144 = vmax.f32 %v45, %v46
    %145 = vmax.xlane.f32.xlu0 %v144
    %v146 = vpop.xlane.xlu0 %145
    %v147 = vmax.f32 %v47, %v48
    %148 = vmax.xlane.f32.xlu0 %v147
    %v149 = vpop.xlane.xlu0 %148
    %v150 = vmax.f32 %v49, %v50
    %151 = vmax.xlane.f32.xlu0 %v150
    %v152 = vpop.xlane.xlu0 %151
    %v153 = vmax.f32 %v51, %v52
    %154 = vmax.xlane.f32.xlu0 %v153
    %v155 = vpop.xlane.xlu0 %154
    %v156 = vmax.f32 %v53, %v54
    %157 = vmax.xlane.f32.xlu0 %v156
    %v158 = vpop.xlane.xlu0 %157
    %v159 = vmax.f32 %v55, %v56
    %160 = vmax.xlane.f32.xlu0 %v159
    %v161 = vpop.xlane.xlu0 %160
    %v162 = vmax.f32 %v57, %v58
    %163 = vmax.xlane.f32.xlu0 %v162
    %v164 = vpop.xlane.xlu0 %163
    %v165 = vmax.f32 %v59, %v60
    %166 = vmax.xlane.f32.xlu0 %v165
    %v167 = vpop.xlane.xlu0 %166
    %v168 = vmax.f32 %v61, %v62
    %169 = vmax.xlane.f32.xlu0 %v168
    %v170 = vpop.xlane.xlu0 %169
    %v171 = vmax.f32 %v63, %v64
    %172 = vmax.xlane.f32.xlu0 %v171
    %v173 = vpop.xlane.xlu0 %172
    %v174 = vmax.f32 %v65, %v66
    %175 = vmax.xlane.f32.xlu0 %v174
    %v176 = vpop.xlane.xlu0 %175
    %v177 = vmax.f32 %v67, %v68
    %178 = vmax.xlane.f32.xlu0 %v177
    %v179 = vpop.xlane.xlu0 %178
    %v180 = vmax.f32 %v69, %v70
    %181 = vmax.xlane.f32.xlu0 %v180
    %v182 = vpop.xlane.xlu0 %181
    %v199 = vlaneseq
    %v200 = vand.u32 %v199, 127
    %v201 = vlaneseq
    %v202 = vshrl.u32 %v201, 7
    %v203 = vsub.s32 %v200, %v202
    %v204 = vrot.slane %v119, %v203
    %v205 = vadd.s32 %v200, 4294967288
    %v206 = vlaneseq
    %v207 = vshrl.u32 %v206, 7
    %v208 = vsub.s32 %v205, %v207
    %v209 = vrot.slane %v120, %v208
    %vm210 = vcmask 130112
    %v211 = vsel %vm210, %v209, %v204
    %v212 = vadd.s32 %v200, 4294967280
    %v213 = vlaneseq
    %v214 = vshrl.u32 %v213, 7
    %v215 = vsub.s32 %v212, %v214
    %v216 = vrot.slane %v121, %v215
    %vm217 = vcmask 195712
    %v218 = vsel %vm217, %v216, %v211
    %v219 = vadd.s32 %v200, 4294967272
    %v220 = vlaneseq
    %v221 = vshrl.u32 %v220, 7
    %v222 = vsub.s32 %v219, %v221
    %v223 = vrot.slane %v122, %v222
    %vm224 = vcmask 261312
    %v225 = vsel %vm224, %v223, %v218
    %v226 = vadd.s32 %v200, 4294967264
    %v227 = vlaneseq
    %v228 = vshrl.u32 %v227, 7
    %v229 = vsub.s32 %v226, %v228
    %v230 = vrot.slane %v123, %v229
    %vm231 = vcmask 326912
    %v232 = vsel %vm231, %v230, %v225
    %v233 = vadd.s32 %v200, 4294967256
    %v234 = vlaneseq
    %v235 = vshrl.u32 %v234, 7
    %v236 = vsub.s32 %v233, %v235
    %v237 = vrot.slane %v124, %v236
    %vm238 = vcmask 392512
    %v239 = vsel %vm238, %v237, %v232
    %v240 = vadd.s32 %v200, 4294967248
    %v241 = vlaneseq
    %v242 = vshrl.u32 %v241, 7
    %v243 = vsub.s32 %v240, %v242
    %v244 = vrot.slane %v125, %v243
    %vm245 = vcmask 458112
    %v246 = vsel %vm245, %v244, %v239
    %v247 = vadd.s32 %v200, 4294967240
    %v248 = vlaneseq
    %v249 = vshrl.u32 %v248, 7
    %v250 = vsub.s32 %v247, %v249
    %v251 = vrot.slane %v126, %v250
    %vm252 = vcmask 523712
    %v253 = vsel %vm252, %v251, %v246
    %v254 = vlaneseq
    %v255 = vshrl.u32 %v254, 7
    %v256 = vsub.s32 %v200, %v255
    %v257 = vrot.slane %v127, %v256
    %v258 = vlaneseq
    %v259 = vshrl.u32 %v258, 7
    %v260 = vsub.s32 %v205, %v259
    %v261 = vrot.slane %v128, %v260
    %v262 = vsel %vm210, %v261, %v257
    %v263 = vlaneseq
    %v264 = vshrl.u32 %v263, 7
    %v265 = vsub.s32 %v212, %v264
    %v266 = vrot.slane %v129, %v265
    %v267 = vsel %vm217, %v266, %v262
    %v268 = vlaneseq
    %v269 = vshrl.u32 %v268, 7
    %v270 = vsub.s32 %v219, %v269
    %v271 = vrot.slane %v130, %v270
    %v272 = vsel %vm224, %v271, %v267
    %v273 = vlaneseq
    %v274 = vshrl.u32 %v273, 7
    %v275 = vsub.s32 %v226, %v274
    %v276 = vrot.slane %v131, %v275
    %v277 = vsel %vm231, %v276, %v272
    %v278 = vlaneseq
    %v279 = vshrl.u32 %v278, 7
    %v280 = vsub.s32 %v233, %v279
    %v281 = vrot.slane %v132, %v280
    %v282 = vsel %vm238, %v281, %v277
    %v283 = vlaneseq
    %v284 = vshrl.u32 %v283, 7
    %v285 = vsub.s32 %v240, %v284
    %v286 = vrot.slane %v133, %v285
    %v287 = vsel %vm245, %v286, %v282
    %v288 = vlaneseq
    %v289 = vshrl.u32 %v288, 7
    %v290 = vsub.s32 %v247, %v289
    %v291 = vrot.slane %v134, %v290
    %v292 = vsel %vm252, %v291, %v287
    %vm293 = vcmask 1041409
    %v294 = vsel %vm293, %v292, %v253
    %v312 = vlaneseq
    %v313 = vshrl.u32 %v312, 7
    %v314 = vsub.s32 %v200, %v313
    %v315 = vrot.slane %v137, %v314
    %v316 = vlaneseq
    %v317 = vshrl.u32 %v316, 7
    %v318 = vsub.s32 %v205, %v317
    %v319 = vrot.slane %v140, %v318
    %v320 = vsel %vm210, %v319, %v315
    %v321 = vlaneseq
    %v322 = vshrl.u32 %v321, 7
    %v323 = vsub.s32 %v212, %v322
    %v324 = vrot.slane %v143, %v323
    %v325 = vsel %vm217, %v324, %v320
    %v326 = vlaneseq
    %v327 = vshrl.u32 %v326, 7
    %v328 = vsub.s32 %v219, %v327
    %v329 = vrot.slane %v146, %v328
    %v330 = vsel %vm224, %v329, %v325
    %v331 = vlaneseq
    %v332 = vshrl.u32 %v331, 7
    %v333 = vsub.s32 %v226, %v332
    %v334 = vrot.slane %v149, %v333
    %v335 = vsel %vm231, %v334, %v330
    %v336 = vlaneseq
    %v337 = vshrl.u32 %v336, 7
    %v338 = vsub.s32 %v233, %v337
    %v339 = vrot.slane %v152, %v338
    %v340 = vsel %vm238, %v339, %v335
    %v341 = vlaneseq
    %v342 = vshrl.u32 %v341, 7
    %v343 = vsub.s32 %v240, %v342
    %v344 = vrot.slane %v155, %v343
    %v345 = vsel %vm245, %v344, %v340
    %v346 = vlaneseq
    %v347 = vshrl.u32 %v346, 7
    %v348 = vsub.s32 %v247, %v347
    %v349 = vrot.slane %v158, %v348
    %v350 = vsel %vm252, %v349, %v345
    %v351 = vlaneseq
    %v352 = vshrl.u32 %v351, 7
    %v353 = vsub.s32 %v200, %v352
    %v354 = vrot.slane %v161, %v353
    %v355 = vlaneseq
    %v356 = vshrl.u32 %v355, 7
    %v357 = vsub.s32 %v205, %v356
    %v358 = vrot.slane %v164, %v357
    %v359 = vsel %vm210, %v358, %v354
    %v360 = vlaneseq
    %v361 = vshrl.u32 %v360, 7
    %v362 = vsub.s32 %v212, %v361
    %v363 = vrot.slane %v167, %v362
    %v364 = vsel %vm217, %v363, %v359
    %v365 = vlaneseq
    %v366 = vshrl.u32 %v365, 7
    %v367 = vsub.s32 %v219, %v366
    %v368 = vrot.slane %v170, %v367
    %v369 = vsel %vm224, %v368, %v364
    %v370 = vlaneseq
    %v371 = vshrl.u32 %v370, 7
    %v372 = vsub.s32 %v226, %v371
    %v373 = vrot.slane %v173, %v372
    %v374 = vsel %vm231, %v373, %v369
    %v375 = vlaneseq
    %v376 = vshrl.u32 %v375, 7
    %v377 = vsub.s32 %v233, %v376
    %v378 = vrot.slane %v176, %v377
    %v379 = vsel %vm238, %v378, %v374
    %v380 = vlaneseq
    %v381 = vshrl.u32 %v380, 7
    %v382 = vsub.s32 %v240, %v381
    %v383 = vrot.slane %v179, %v382
    %v384 = vsel %vm245, %v383, %v379
    %v385 = vlaneseq
    %v386 = vshrl.u32 %v385, 7
    %v387 = vsub.s32 %v247, %v386
    %v388 = vrot.slane %v182, %v387
    %v389 = vsel %vm252, %v388, %v384
    %vm390 = vcmask 1043459
    %v391 = vsel %vm390, %v389, %v350
    %vm393 = vcmask 1041408
    %v394 = vsel %vm393, %v294, %v391
    %v395 = vld [vmem:[%s1] sm:$0xff]
    %v396 = vld [vmem:[%s1 + $0x8] sm:$0xff]
    %v397 = vld [vmem:[%s1 + $0x10] sm:$0xff]
    %v398 = vld [vmem:[%s1 + $0x18] sm:$0xff]
    %v399 = vld [vmem:[%s1 + $0x20] sm:$0xff]
    %v400 = vld [vmem:[%s1 + $0x28] sm:$0xff]
    %v401 = vld [vmem:[%s1 + $0x30] sm:$0xff]
    %v402 = vld [vmem:[%s1 + $0x38] sm:$0xff]
    %v403 = vld [vmem:[%s2] sm:$0x1]
    %v405 = vlaneseq
    %v406 = vshrl.u32 %v405, 7
    %v407 = vsub.s32 0, %v406
    %v408 = vrot.slane %v403, %v407
    %vm410 = vcmask 523264
    %v412 = vsel %vm410, %v394, 0
    %414 = vmatprep.subr.mxu0 0.0
    %415 = vmatpush1.msra.mxu0 0.0
    %416 = vmatprep.subr.mxu0 0.0
    %417 = vmatpush1.msra.mxu0 0.0
    %418 = vmatprep.subr.mxu0 0.0
    %419 = vmatpush1.msra.mxu0 0.0
    %420 = vmatprep.subr.mxu0 0.0
    %421 = vmatpush1.msra.mxu0 0.0
    %422 = vmatprep.subr.mxu0 0.0
    %423 = vmatpush1.msra.mxu0 0.0
    %424 = vmatprep.subr.mxu0 0.0
    %425 = vmatpush1.msra.mxu0 0.0
    %426 = vmatprep.subr.mxu0 0.0
    %427 = vmatpush1.msra.mxu0 0.0
    %428 = vmatprep.subr.mxu0 0.0
    %429 = vmatpush1.msra.mxu0 0.0
    %430 = vmatprep.subr.mxu0 0.0
    %431 = vmatpush1.msra.mxu0 %v402
    %432 = vmatprep.subr.mxu0 0.0
    %433 = vmatpush1.msra.mxu0 %v401
    %434 = vmatprep.subr.mxu0 0.0
    %435 = vmatpush1.msra.mxu0 %v400
    %436 = vmatprep.subr.mxu0 0.0
    %437 = vmatpush1.msra.mxu0 %v399
    %438 = vmatprep.subr.mxu0 0.0
    %439 = vmatpush1.msra.mxu0 %v398
    %440 = vmatprep.subr.mxu0 0.0
    %441 = vmatpush1.msra.mxu0 %v397
    %442 = vmatprep.subr.mxu0 0.0
    %443 = vmatpush1.msra.mxu0 %v396
    %444 = vmatprep.subr.mxu0 0.0
    %445 = vmatpush1.msra.mxu0 %v395
    %446 = vmatprep.subr.mxu0 0.0
    %447 = vmatpush2.msra.mxu0 0.0
    %448 = vmatprep.subr.mxu0 0.0
    %449 = vmatpush2.msra.mxu0 0.0
    %450 = vmatprep.subr.mxu0 0.0
    %451 = vmatpush2.msra.mxu0 0.0
    %452 = vmatprep.subr.mxu0 0.0
    %453 = vmatpush2.msra.mxu0 0.0
    %454 = vmatprep.subr.mxu0 0.0
    %455 = vmatpush2.msra.mxu0 0.0
    %456 = vmatprep.subr.mxu0 0.0
    %457 = vmatpush2.msra.mxu0 0.0
    %458 = vmatprep.subr.mxu0 0.0
    %459 = vmatpush2.msra.mxu0 0.0
    %460 = vmatprep.subr.mxu0 0.0
    %461 = vmatpush2.msra.mxu0 0.0
    %462 = vmatprep.subr.mxu0 0.0
    %463 = vmatpush2.msra.mxu0 0.0
    %464 = vmatprep.subr.mxu0 0.0
    %465 = vmatpush2.msra.mxu0 0.0
    %466 = vmatprep.subr.mxu0 0.0
    %467 = vmatpush2.msra.mxu0 0.0
    %468 = vmatprep.subr.mxu0 0.0
    %469 = vmatpush2.msra.mxu0 0.0
    %470 = vmatprep.subr.mxu0 0.0
    %471 = vmatpush2.msra.mxu0 0.0
    %472 = vmatprep.subr.mxu0 0.0
    %473 = vmatpush2.msra.mxu0 0.0
    %474 = vmatprep.subr.mxu0 0.0
    %475 = vmatpush2.msra.mxu0 0.0
    %476 = vmatprep.subr.mxu0 0.0
    %477 = vmatpush2.msra.mxu0 0.0
    %478 = vmatprep.mubr.f32.mxu0 0.0
    %479 = vmatmul.mubr.f32.gmra.mxu0 %v412
    %v480 = vpop.f32.mrf.mxu0
    %v481 = vadd.f32 %v408, %v480
    %v482 = vpop.f32.mrf.mxu0
    %483 = vdwg.mxu0
    %v484 = vmax.f32 %v481, 0.0
    %v485 = vld [vmem:[%s3] sm:$0xf]
    %v486 = vld [vmem:[%s4] sm:$0x1]
    %v488 = vlaneseq
    %v489 = vshrl.u32 %v488, 7
    %v490 = vsub.s32 0, %v489
    %v491 = vrot.slane %v486, %v490
    %vm493 = vcmask 31744
    %v495 = vsel %vm493, %v484, 0
    %vm497 = vcmask 1043456
    %v499 = vsel %vm497, %v485, 0
    %501 = vmatprep.subr.mxu0 0.0
    %502 = vmatpush1.msra.mxu0 0.0
    %503 = vmatprep.subr.mxu0 0.0
    %504 = vmatpush1.msra.mxu0 0.0
    %505 = vmatprep.subr.mxu0 0.0
    %506 = vmatpush1.msra.mxu0 0.0
    %507 = vmatprep.subr.mxu0 0.0
    %508 = vmatpush1.msra.mxu0 0.0
    %509 = vmatprep.subr.mxu0 0.0
    %510 = vmatpush1.msra.mxu0 0.0
    %511 = vmatprep.subr.mxu0 0.0
    %512 = vmatpush1.msra.mxu0 0.0
    %513 = vmatprep.subr.mxu0 0.0
    %514 = vmatpush1.msra.mxu0 0.0
    %515 = vmatprep.subr.mxu0 0.0
    %516 = vmatpush1.msra.mxu0 0.0
    %517 = vmatprep.subr.mxu0 0.0
    %518 = vmatpush1.msra.mxu0 0.0
    %519 = vmatprep.subr.mxu0 0.0
    %520 = vmatpush1.msra.mxu0 0.0
    %521 = vmatprep.subr.mxu0 0.0
    %522 = vmatpush1.msra.mxu0 0.0
    %523 = vmatprep.subr.mxu0 0.0
    %524 = vmatpush1.msra.mxu0 0.0
    %525 = vmatprep.subr.mxu0 0.0
    %526 = vmatpush1.msra.mxu0 0.0
    %527 = vmatprep.subr.mxu0 0.0
    %528 = vmatpush1.msra.mxu0 0.0
    %529 = vmatprep.subr.mxu0 0.0
    %530 = vmatpush1.msra.mxu0 0.0
    %531 = vmatprep.subr.mxu0 0.0
    %532 = vmatpush1.msra.mxu0 %v499
    %533 = vmatprep.subr.mxu0 0.0
    %534 = vmatpush2.msra.mxu0 0.0
    %535 = vmatprep.subr.mxu0 0.0
    %536 = vmatpush2.msra.mxu0 0.0
    %537 = vmatprep.subr.mxu0 0.0
    %538 = vmatpush2.msra.mxu0 0.0
    %539 = vmatprep.subr.mxu0 0.0
    %540 = vmatpush2.msra.mxu0 0.0
    %541 = vmatprep.subr.mxu0 0.0
    %542 = vmatpush2.msra.mxu0 0.0
    %543 = vmatprep.subr.mxu0 0.0
    %544 = vmatpush2.msra.mxu0 0.0
    %545 = vmatprep.subr.mxu0 0.0
    %546 = vmatpush2.msra.mxu0 0.0
    %547 = vmatprep.subr.mxu0 0.0
    %548 = vmatpush2.msra.mxu0 0.0
    %549 = vmatprep.subr.mxu0 0.0
    %550 = vmatpush2.msra.mxu0 0.0
    %551 = vmatprep.subr.mxu0 0.0
    %552 = vmatpush2.msra.mxu0 0.0
    %553 = vmatprep.subr.mxu0 0.0
    %554 = vmatpush2.msra.mxu0 0.0
    %555 = vmatprep.subr.mxu0 0.0
    %556 = vmatpush2.msra.mxu0 0.0
    %557 = vmatprep.subr.mxu0 0.0
    %558 = vmatpush2.msra.mxu0 0.0
    %559 = vmatprep.subr.mxu0 0.0
    %560 = vmatpush2.msra.mxu0 0.0
    %561 = vmatprep.subr.mxu0 0.0
    %562 = vmatpush2.msra.mxu0 0.0
    %563 = vmatprep.subr.mxu0 0.0
    %564 = vmatpush2.msra.mxu0 0.0
    %565 = vmatprep.mubr.f32.mxu0 0.0
    %566 = vmatmul.mubr.f32.gmra.mxu0 %v495
    %v567 = vpop.f32.mrf.mxu0
    %v568 = vadd.f32 %v491, %v567
    %v569 = vpop.f32.mrf.mxu0
    %570 = vdwg.mxu0
    %v572 = vrot.slane %v568, 2
    %v574 = vadd.f32 %v568, %v572
    %s575 = sld [smem:[#allocation2]]
    %vm576 = vcmp.ge.f32.partialorder %v574, 0.0
    %v577 = vstv %s575
    %v578 = vmul.f32 %v577, %v574
    %v579 = vsel %vm576, %v574, %v578
    %vm580 = vcmask 517120
    %581 = vst.msk [vmem:[#allocation6] sm:$0x3] %vm580, %v579
    // Predicated region
    $region30: #{tpu_custom_call.1} parent=1 // pred_check
      _
    $region31: #{tpu_custom_call.1} parent=1 // pred_check_branch
      %583 = sbr.rel (0) target = $region33
    $region32: #{tpu_custom_call.1} parent=1 // pred_region
      %s585 = ssub.s32 32, 32
      %586 = vsyncadd [#allocation5], %s585
      %s588 = sshll.u32 [#allocation6], 4
      %s589 = int_to_ptr.vmem [resolvable:$true] %s588
      %591 = dma.vmem_to_hbm [thread:$0]  %s589, 32, %s6, [#allocation5]
    $region33: #{tpu_custom_call.1} parent=1 // pred_fallthru
      _
    // Predicated region
    $region34: #{tpu_custom_call.1} parent=1 // pred_check
      _
    $region35: #{tpu_custom_call.1} parent=1 // pred_check_branch
      %593 = sbr.rel (0) target = $region37
    $region36: #{tpu_custom_call.1} parent=1 // pred_region
      %594 = dma.done [#allocation5], 32
    $region37: #{tpu_custom_call.1} parent=1 // pred_fallthru
      _
    %595 = vsyncpa [#allocation4], 1
    %596 = vsyncpa [#allocation5], 1

</llo_original>
